<compile_context>
chip_gen: v6e
topology: v6e:2x2x1
jax: 0.10.0
libtpu: 0.0.40
codegen_flags: <defaults>
</compile_context>

<pallas_src>
import functools

import jax
import jax.numpy as jnp
from jax.experimental import pallas as pl
from jax.experimental.pallas import tpu as pltpu


def _round_up(x: int, m: int) -> int:
    return ((x + m - 1) // m) * m


def _perturbation_kernel(state_ref, act_ref, w1_ref, b1_ref, w2_ref, b2_ref,
                         out_ref, *, scale, max_action):
    # Feature-major: state_ref [S, tb], act_ref [A, tb], batch on lanes.
    # Sublane concat (S and A are multiples of 8) -> one K = S+A matmul.
    x = jnp.concatenate([state_ref[...], act_ref[...]], axis=0)          # [S+A, tb]

    # Hidden layer: [H, S+A] @ [S+A, tb] + bias, ReLU.
    h = jnp.dot(w1_ref[...], x, preferred_element_type=jnp.float32)      # [H, tb]
    h = jnp.maximum(h + b1_ref[...], 0.0)

    # Output layer: [A, H] @ [H, tb] + bias -> logits.
    logits = jnp.dot(w2_ref[...], h, preferred_element_type=jnp.float32) # [A, tb]
    logits = logits + b2_ref[...]

    # Perturbation: scale * tanh(logits) + action, clamp.  (scale = phi * max_action)
    out = scale * jnp.tanh(logits) + act_ref[...].astype(jnp.float32)
    out_ref[...] = jnp.clip(out, -max_action, max_action).astype(out_ref.dtype)


def perturbation_forward(state, action, w1, b1, w2, b2, *,
                         max_action=1.0, phi=0.05, tile_b=4096):
    """Fused Perturbation forward.

    state: [B, S], action: [B, A]
    PyTorch-layout parameters:
      w1: [H, S+A], b1: [H]   (nn.Linear(S+A, H))
      w2: [A, H],   b2: [A]   (nn.Linear(H, A))
    Returns: [B, A].
    """
    B, S = state.shape
    _, A = action.shape
    H, K = w1.shape
    assert K == S + A and w2.shape == (A, H)

    # Layout plumbing: batch onto lanes; weights already [out, in]; biases as columns.
    state_t = state.T                      # [S, B]
    action_t = action.T                    # [A, B]
    b1_col = b1.reshape(H, 1)
    b2_col = b2.reshape(A, 1)

    # Batch (lane) tile: multiple of 128, capped at tile_b, and at most
    # ~half the batch (rounded up) so v7x's 2 TensorCores both get a grid step
    # whenever the batch is large enough.
    tb = max(128, min(tile_b, _round_up(-(-B // 2), 128)))
    grid = pl.cdiv(B, tb)                  # boundary block masked by Pallas

    kernel = functools.partial(
        _perturbation_kernel,
        scale=float(phi) * float(max_action),
        max_action=float(max_action),
    )

    def lane_spec(feat):
        return pl.BlockSpec((feat, tb), lambda i: (0, i))

    def resident_spec(rows, cols):
        # Full-extent block, constant index_map -> stays in VMEM across steps.
        return pl.BlockSpec((rows, cols), lambda i: (0, 0))

    bytes_accessed = 4 * (B * (S + A)        # state + action reads
                          + B * A            # output writes
                          + (S + A) * H + H  # layer-1 weights + bias
                          + H * A + A)       # layer-2 weights + bias

    out_t = pl.pallas_call(
        kernel,
        out_shape=jax.ShapeDtypeStruct((A, B), jnp.float32),
        grid=(grid,),
        in_specs=[
            lane_spec(S),                 # state  [S, B]
            lane_spec(A),                 # action [A, B]
            resident_spec(H, S + A),      # w1
            resident_spec(H, 1),          # b1
            resident_spec(A, H),          # w2
            resident_spec(A, 1),          # b2
        ],
        out_specs=lane_spec(A),           # out [A, B] (lane-dense stores)
        compiler_params=pltpu.CompilerParams(
            dimension_semantics=("parallel",)),
        cost_estimate=pl.CostEstimate(
            flops=2 * B * (S + A) * H + 2 * B * H * A,
            transcendentals=B * A,
            bytes_accessed=bytes_accessed,
        ),
    )(state_t, action_t, w1, b1_col, w2, b2_col)

    return out_t.T                        # back to [B, A]


def _reference_forward(state, action, w1, b1, w2, b2, *, max_action, phi):
    x = jnp.concatenate([state, action], axis=-1)
    h = jnp.maximum(x @ w1.T + b1, 0.0)
    logits = h @ w2.T + b2
    noise = phi * max_action * jnp.tanh(logits)
    return jnp.clip(noise + action, -max_action, max_action)


if __name__ == "__main__":
    # Small shapes consistent with the module: flat state / action vectors.
    S, A, H = 16, 8, 32
    MAX_ACTION = 1.0
    PHI = 0.05

    key = jax.random.PRNGKey(0)
    _, _, k_w1, k_b1, k_w2, k_b2 = jax.random.split(key, 6)

    # Deterministic synthetic parameters for the preprocess MLP, PyTorch layout:
    # Linear(S+A, H): weight [H, S+A], bias [H]; Linear(H, A): weight [A, H], bias [A].
    w1 = 0.1 * jax.random.normal(k_w1, (H, S + A), dtype=jnp.float32)
    b1 = 0.1 * jax.random.normal(k_b1, (H,), dtype=jnp.float32)
    w2 = 0.1 * jax.random.normal(k_w2, (A, H), dtype=jnp.float32)
    b2 = 0.1 * jax.random.normal(k_b2, (A,), dtype=jnp.float32)

    # B=8  -> single (masked) grid step; B=300 -> two grid steps, partial last block.
    for B in (8, 300):
        k_state, k_action = jax.random.split(jax.random.fold_in(key, B))
        state = jax.random.normal(k_state, (B, S), dtype=jnp.float32)
        action = jnp.clip(jax.random.normal(k_action, (B, A), dtype=jnp.float32),
                          -MAX_ACTION, MAX_ACTION)

        out = perturbation_forward(state, action, w1, b1, w2, b2,
                                   max_action=MAX_ACTION, phi=PHI)
        out = jax.block_until_ready(out)

        ref = _reference_forward(state, action, w1, b1, w2, b2,
                                 max_action=MAX_ACTION, phi=PHI)
        assert out.shape == (B, A)
        assert jnp.allclose(out, ref, atol=1e-5, rtol=1e-5)

    print("KERNEL_OK")
</pallas_src>

<mosaic_0001>
module attributes {stable_mosaic.version = 11 : i64} {
  func.func @_perturbation_kernel(%arg0: i32, %arg1: memref<16x128xf32, #tpu.memory_space<vmem>>, %arg2: memref<8x128xf32, #tpu.memory_space<vmem>>, %arg3: memref<32x24xf32, #tpu.memory_space<vmem>>, %arg4: memref<32x1xf32, #tpu.memory_space<vmem>>, %arg5: memref<8x32xf32, #tpu.memory_space<vmem>>, %arg6: memref<8x1xf32, #tpu.memory_space<vmem>>, %arg7: memref<8x128xf32, #tpu.memory_space<vmem>>) attributes {dimension_semantics = [#tpu.dimension_semantics<parallel>], iteration_bounds = array<i64: 1>, scalar_prefetch = 0 : i64, scratch_operands = 0 : i64, tpu.core_type = #tpu.core_type<tc>, window_params = [{transform_indices = @transform_0, window_bounds = array<i64: 16, 128>}, {transform_indices = @transform_1, window_bounds = array<i64: 8, 128>}, {pipeline_mode = #tpu.pipeline_mode<synchronous>, transform_indices = @transform_2, window_bounds = array<i64: 32, 24>}, {pipeline_mode = #tpu.pipeline_mode<synchronous>, transform_indices = @transform_3, window_bounds = array<i64: 32, 1>}, {pipeline_mode = #tpu.pipeline_mode<synchronous>, transform_indices = @transform_4, window_bounds = array<i64: 8, 32>}, {pipeline_mode = #tpu.pipeline_mode<synchronous>, transform_indices = @transform_5, window_bounds = array<i64: 8, 1>}, {transform_indices = @transform_6, window_bounds = array<i64: 8, 128>}]} {
    %c0 = arith.constant 0 : index
    %c0_0 = arith.constant 0 : index
    %0 = vector.load %arg1[%c0, %c0_0] : memref<16x128xf32, #tpu.memory_space<vmem>>, vector<16x128xf32>
    %c0_1 = arith.constant 0 : index
    %c0_2 = arith.constant 0 : index
    %1 = vector.load %arg2[%c0_1, %c0_2] : memref<8x128xf32, #tpu.memory_space<vmem>>, vector<8x128xf32>
    %2 = tpu.concatenate %0, %1 in 0 : vector<16x128xf32>, vector<8x128xf32> -> vector<24x128xf32>
    %c0_3 = arith.constant 0 : index
    %c0_4 = arith.constant 0 : index
    %3 = vector.load %arg3[%c0_3, %c0_4] : memref<32x24xf32, #tpu.memory_space<vmem>>, vector<32x24xf32>
    %cst = arith.constant dense<0.000000e+00> : vector<32x128xf32>
    %4 = tpu.matmul %3, %2, %cst {dimension_numbers = #tpu.dot_dimension_numbers<[1], [0], [0], [1], [0, 0, 1, 1], [], []>} : vector<32x24xf32>, vector<24x128xf32>, vector<32x128xf32> -> vector<32x128xf32>
    %c0_5 = arith.constant 0 : index
    %c0_6 = arith.constant 0 : index
    %5 = vector.load %arg4[%c0_5, %c0_6] : memref<32x1xf32, #tpu.memory_space<vmem>>, vector<32x1xf32>
    %6 = vector.broadcast %5 : vector<32x1xf32> to vector<32x128xf32>
    %7 = arith.addf %4, %6 : vector<32x128xf32>
    %cst_7 = arith.constant 0.000000e+00 : f32
    %8 = vector.broadcast %cst_7 : f32 to vector<32x128xf32>
    %9 = arith.maximumf %7, %8 : vector<32x128xf32>
    %c0_8 = arith.constant 0 : index
    %c0_9 = arith.constant 0 : index
    %10 = vector.load %arg5[%c0_8, %c0_9] : memref<8x32xf32, #tpu.memory_space<vmem>>, vector<8x32xf32>
    %cst_10 = arith.constant dense<0.000000e+00> : vector<8x128xf32>
    %11 = tpu.matmul %10, %9, %cst_10 {dimension_numbers = #tpu.dot_dimension_numbers<[1], [0], [0], [1], [0, 0, 1, 1], [], []>} : vector<8x32xf32>, vector<32x128xf32>, vector<8x128xf32> -> vector<8x128xf32>
    %c0_11 = arith.constant 0 : index
    %c0_12 = arith.constant 0 : index
    %12 = vector.load %arg6[%c0_11, %c0_12] : memref<8x1xf32, #tpu.memory_space<vmem>>, vector<8x1xf32>
    %13 = vector.broadcast %12 : vector<8x1xf32> to vector<8x128xf32>
    %14 = arith.addf %11, %13 : vector<8x128xf32>
    %15 = math.tanh %14 : vector<8x128xf32>
    %cst_13 = arith.constant 5.000000e-02 : f32
    %16 = vector.broadcast %cst_13 : f32 to vector<8x128xf32>
    %17 = arith.mulf %16, %15 : vector<8x128xf32>
    %c0_14 = arith.constant 0 : index
    %c0_15 = arith.constant 0 : index
    %18 = vector.load %arg2[%c0_14, %c0_15] : memref<8x128xf32, #tpu.memory_space<vmem>>, vector<8x128xf32>
    %19 = arith.addf %17, %18 : vector<8x128xf32>
    %cst_16 = arith.constant -1.000000e+00 : f32
    %cst_17 = arith.constant 1.000000e+00 : f32
    %20 = vector.broadcast %cst_16 : f32 to vector<8x128xf32>
    %21 = arith.maximumf %20, %19 : vector<8x128xf32>
    %22 = vector.broadcast %cst_17 : f32 to vector<8x128xf32>
    %23 = arith.minimumf %22, %21 : vector<8x128xf32>
    %c0_18 = arith.constant 0 : index
    %c0_19 = arith.constant 0 : index
    %24 = vector.load %arg7[%c0_18, %c0_19] : memref<8x128xf32, #tpu.memory_space<vmem>>, vector<8x128xf32>
    tpu.vector_store %arg7[%c0_18, %c0_19], %23 {strides = array<i32>} : memref<8x128xf32, #tpu.memory_space<vmem>>, vector<8x128xf32>,
    return
  }
  func.func @transform_0(%arg0: i32) -> (i32, i32) {
    %c0_i32 = arith.constant 0 : i32
    %c0_i32_0 = arith.constant 0 : i32
    return %c0_i32, %arg0 : i32, i32
  }
  func.func @transform_1(%arg0: i32) -> (i32, i32) {
    %c0_i32 = arith.constant 0 : i32
    %c0_i32_0 = arith.constant 0 : i32
    return %c0_i32, %arg0 : i32, i32
  }
  func.func @transform_2(%arg0: i32) -> (i32, i32) {
    %c0_i32 = arith.constant 0 : i32
    %c0_i32_0 = arith.constant 0 : i32
    %c0_i32_1 = arith.constant 0 : i32
    return %c0_i32, %c0_i32_0 : i32, i32
  }
  func.func @transform_3(%arg0: i32) -> (i32, i32) {
    %c0_i32 = arith.constant 0 : i32
    %c0_i32_0 = arith.constant 0 : i32
    %c0_i32_1 = arith.constant 0 : i32
    return %c0_i32, %c0_i32_0 : i32, i32
  }
  func.func @transform_4(%arg0: i32) -> (i32, i32) {
    %c0_i32 = arith.constant 0 : i32
    %c0_i32_0 = arith.constant 0 : i32
    %c0_i32_1 = arith.constant 0 : i32
    return %c0_i32, %c0_i32_0 : i32, i32
  }
  func.func @transform_5(%arg0: i32) -> (i32, i32) {
    %c0_i32 = arith.constant 0 : i32
    %c0_i32_0 = arith.constant 0 : i32
    %c0_i32_1 = arith.constant 0 : i32
    return %c0_i32, %c0_i32_0 : i32, i32
  }
  func.func @transform_6(%arg0: i32) -> (i32, i32) {
    %c0_i32 = arith.constant 0 : i32
    %c0_i32_0 = arith.constant 0 : i32
    return %c0_i32, %arg0 : i32, i32
  }
}

</mosaic_0001>

<llo_original>
// kernel: tpu_custom_call.1
$region0: #{tpu_custom_call.1}
  #allocation0 [shape = 'u32[]', space=smem, size = 0x4, offset = 0x4, fixed_abs, tag = 'smem constant byte address 0x4 - core index']
  #allocation1 [shape = 'u32[144,128]{1,0:T(1,128)}', space=vmem, size = 0x12000, scoped, tag = 'internal scratch']
  %s0 = inlined_call_operand.vmem [shape: f32[16,8], index: 0, kind: input, shape index: {}]
  %s1 = inlined_call_operand.vmem [shape: f32[8,8], index: 1, kind: input, shape index: {}]
  %s2 = inlined_call_operand.vmem [shape: f32[32,24], index: 2, kind: input, shape index: {}]
  %s3 = inlined_call_operand.vmem [shape: f32[32,1], index: 3, kind: input, shape index: {}]
  %s4 = inlined_call_operand.vmem [shape: f32[8,32], index: 4, kind: input, shape index: {}]
  %s5 = inlined_call_operand.vmem [shape: f32[8,1], index: 5, kind: input, shape index: {}]
  %s6 = inlined_call_operand.hbm [shape: f32[8,8], index: 6, kind: output, shape index: {}]
  %s7 = sld [smem:[#allocation0]]
  $region34: #{tpu_custom_call.1} parent=0
    _
  %s9 = ssub.s32 1, %s7
  %s10 = scalar_select 0, %s9, %s7
  $region1: #{tpu_custom_call.1} parent=0
    #allocation2 [shape = 'u8[4096]{0}', space=vmem, size = 0x1000, scoped, tag = 'output window, operand 0, single buffered']
    #allocation3 [shape = 's32[1]{0}', space=sflag, size = 0x4, scoped, tag = 'scoped memory for tpu_custom_call.1']
    %11 = vsyncpa [#allocation3], 0
    // Predicated region
    $region2: #{tpu_custom_call.1} parent=1 // pred_check
      _
    $region3: #{tpu_custom_call.1} parent=1 // pred_check_branch
      %13 = sbr.rel (0) target = $region5
    $region4: #{tpu_custom_call.1} parent=1 // pred_region
      _
    $region5: #{tpu_custom_call.1} parent=1 // pred_fallthru
      _
    // Predicated region
    $region6: #{tpu_custom_call.1} parent=1 // pred_check
      _
    $region7: #{tpu_custom_call.1} parent=1 // pred_check_branch
      %15 = sbr.rel (0) target = $region9
    $region8: #{tpu_custom_call.1} parent=1 // pred_region
      _
    $region9: #{tpu_custom_call.1} parent=1 // pred_fallthru
      _
    // Predicated region
    $region10: #{tpu_custom_call.1} parent=1 // pred_check
      _
    $region11: #{tpu_custom_call.1} parent=1 // pred_check_branch
      %17 = sbr.rel (0) target = $region13
    $region12: #{tpu_custom_call.1} parent=1 // pred_region
      _
    $region13: #{tpu_custom_call.1} parent=1 // pred_fallthru
      _
    // Predicated region
    $region14: #{tpu_custom_call.1} parent=1 // pred_check
      _
    $region15: #{tpu_custom_call.1} parent=1 // pred_check_branch
      %19 = sbr.rel (0) target = $region17
    $region16: #{tpu_custom_call.1} parent=1 // pred_region
      _
    $region17: #{tpu_custom_call.1} parent=1 // pred_fallthru
      _
    // Predicated region
    $region18: #{tpu_custom_call.1} parent=1 // pred_check
      _
    $region19: #{tpu_custom_call.1} parent=1 // pred_check_branch
      %21 = sbr.rel (0) target = $region21
    $region20: #{tpu_custom_call.1} parent=1 // pred_region
      _
    $region21: #{tpu_custom_call.1} parent=1 // pred_fallthru
      _
    // Predicated region
    $region22: #{tpu_custom_call.1} parent=1 // pred_check
      _
    $region23: #{tpu_custom_call.1} parent=1 // pred_check_branch
      %23 = sbr.rel (0) target = $region25
    $region24: #{tpu_custom_call.1} parent=1 // pred_region
      _
    $region25: #{tpu_custom_call.1} parent=1 // pred_fallthru
      _
    %v24 = vld [vmem:[%s0] sm:$0xff]
    %v25 = vld [vmem:[%s0 + $0x8] sm:$0xff]
    %v26 = vld [vmem:[%s1] sm:$0xff]
    %v27 = vld [vmem:[%s2] sm:$0xff]
    %v28 = vld [vmem:[%s2 + $0x8] sm:$0xff]
    %v29 = vld [vmem:[%s2 + $0x10] sm:$0xff]
    %v30 = vld [vmem:[%s2 + $0x18] sm:$0xff]
    %v31 = vld [vmem:[%s3] sm:$0xff]
    %v32 = vld [vmem:[%s3 + $0x8] sm:$0xff]
    %v33 = vld [vmem:[%s3 + $0x10] sm:$0xff]
    %v34 = vld [vmem:[%s3 + $0x18] sm:$0xff]
    %36 = vset.pattern.permute.xlu0 0
    %37 = vperm.xlu0 %36, %v31
    %v38 = vpop.permute.xlu0 %37
    %41 = vset.pattern.permute.xlu0 0
    %42 = vperm.xlu0 %41, %v32
    %v43 = vpop.permute.xlu0 %42
    %46 = vset.pattern.permute.xlu0 0
    %47 = vperm.xlu0 %46, %v33
    %v48 = vpop.permute.xlu0 %47
    %51 = vset.pattern.permute.xlu0 0
    %52 = vperm.xlu0 %51, %v34
    %v53 = vpop.permute.xlu0 %52
    %vm55 = vcmask 195584
    %v57 = vsel %vm55, %v27, 0
    %v60 = vsel %vm55, %v28, 0
    %v63 = vsel %vm55, %v29, 0
    %v66 = vsel %vm55, %v30, 0
    %68 = vmatprep.subr.mxu0 0.0
    %69 = vmatpush1.msra.mxu0 0.0
    %70 = vmatprep.subr.mxu0 0.0
    %71 = vmatpush1.msra.mxu0 0.0
    %72 = vmatprep.subr.mxu0 0.0
    %73 = vmatpush1.msra.mxu0 0.0
    %74 = vmatprep.subr.mxu0 0.0
    %75 = vmatpush1.msra.mxu0 0.0
    %76 = vmatprep.subr.mxu0 0.0
    %77 = vmatpush1.msra.mxu0 0.0
    %78 = vmatprep.subr.mxu0 0.0
    %79 = vmatpush1.msra.mxu0 0.0
    %80 = vmatprep.subr.mxu0 0.0
    %81 = vmatpush1.msra.mxu0 0.0
    %82 = vmatprep.subr.mxu0 0.0
    %83 = vmatpush1.msra.mxu0 0.0
    %84 = vmatprep.subr.mxu0 0.0
    %85 = vmatpush1.msra.mxu0 0.0
    %86 = vmatprep.subr.mxu0 0.0
    %87 = vmatpush1.msra.mxu0 0.0
    %88 = vmatprep.subr.mxu0 0.0
    %89 = vmatpush1.msra.mxu0 0.0
    %90 = vmatprep.subr.mxu0 0.0
    %91 = vmatpush1.msra.mxu0 0.0
    %92 = vmatprep.subr.mxu0 0.0
    %93 = vmatpush1.msra.mxu0 0.0
    %94 = vmatprep.subr.mxu0 0.0
    %95 = vmatpush1.msra.mxu0 %v26
    %96 = vmatprep.subr.mxu0 0.0
    %97 = vmatpush1.msra.mxu0 %v25
    %98 = vmatprep.subr.mxu0 0.0
    %99 = vmatpush1.msra.mxu0 %v24
    %100 = vmatprep.subr.mxu0 0.0
    %101 = vmatpush2.msra.mxu0 0.0
    %102 = vmatprep.subr.mxu0 0.0
    %103 = vmatpush2.msra.mxu0 0.0
    %104 = vmatprep.subr.mxu0 0.0
    %105 = vmatpush2.msra.mxu0 0.0
    %106 = vmatprep.subr.mxu0 0.0
    %107 = vmatpush2.msra.mxu0 0.0
    %108 = vmatprep.subr.mxu0 0.0
    %109 = vmatpush2.msra.mxu0 0.0
    %110 = vmatprep.subr.mxu0 0.0
    %111 = vmatpush2.msra.mxu0 0.0
    %112 = vmatprep.subr.mxu0 0.0
    %113 = vmatpush2.msra.mxu0 0.0
    %114 = vmatprep.subr.mxu0 0.0
    %115 = vmatpush2.msra.mxu0 0.0
    %116 = vmatprep.subr.mxu0 0.0
    %117 = vmatpush2.msra.mxu0 0.0
    %118 = vmatprep.subr.mxu0 0.0
    %119 = vmatpush2.msra.mxu0 0.0
    %120 = vmatprep.subr.mxu0 0.0
    %121 = vmatpush2.msra.mxu0 0.0
    %122 = vmatprep.subr.mxu0 0.0
    %123 = vmatpush2.msra.mxu0 0.0
    %124 = vmatprep.subr.mxu0 0.0
    %125 = vmatpush2.msra.mxu0 0.0
    %126 = vmatprep.subr.mxu0 0.0
    %127 = vmatpush2.msra.mxu0 0.0
    %128 = vmatprep.subr.mxu0 0.0
    %129 = vmatpush2.msra.mxu0 0.0
    %130 = vmatprep.subr.mxu0 0.0
    %131 = vmatpush2.msra.mxu0 0.0
    %132 = vmatprep.mubr.f32.mxu0 0.0
    %133 = vmatmul.mubr.f32.gmra.mxu0 %v57
    %v134 = vpop.f32.mrf.mxu0
    %v135 = vadd.f32 %v38, %v134
    %v136 = vpop.f32.mrf.mxu0
    %137 = vmatprep.mubr.f32.mxu0 0.0
    %138 = vmatmul.mubr.f32.gmra.mxu0 %v60
    %v139 = vpop.f32.mrf.mxu0
    %v140 = vadd.f32 %v43, %v139
    %v141 = vpop.f32.mrf.mxu0
    %142 = vmatprep.mubr.f32.mxu0 0.0
    %143 = vmatmul.mubr.f32.gmra.mxu0 %v63
    %v144 = vpop.f32.mrf.mxu0
    %v145 = vadd.f32 %v48, %v144
    %v146 = vpop.f32.mrf.mxu0
    %147 = vmatprep.mubr.f32.mxu0 0.0
    %148 = vmatmul.mubr.f32.gmra.mxu0 %v66
    %v149 = vpop.f32.mrf.mxu0
    %v150 = vadd.f32 %v53, %v149
    %v151 = vpop.f32.mrf.mxu0
    %152 = vdwg.mxu0
    %v153 = vmax.f32 %v135, 0.0
    %v154 = vmax.f32 %v140, 0.0
    %v155 = vmax.f32 %v145, 0.0
    %v156 = vmax.f32 %v150, 0.0
    %v157 = vld [vmem:[%s4] sm:$0xff]
    %v158 = vld [vmem:[%s5] sm:$0xff]
    %160 = vset.pattern.permute.xlu0 0
    %161 = vperm.xlu0 %160, %v158
    %v162 = vpop.permute.xlu0 %161
    %vm164 = vcmask 261120
    %v166 = vsel %vm164, %v157, 0
    %168 = vmatprep.subr.mxu0 0.0
    %169 = vmatpush1.msra.mxu0 0.0
    %170 = vmatprep.subr.mxu0 0.0
    %171 = vmatpush1.msra.mxu0 0.0
    %172 = vmatprep.subr.mxu0 0.0
    %173 = vmatpush1.msra.mxu0 0.0
    %174 = vmatprep.subr.mxu0 0.0
    %175 = vmatpush1.msra.mxu0 0.0
    %176 = vmatprep.subr.mxu0 0.0
    %177 = vmatpush1.msra.mxu0 0.0
    %178 = vmatprep.subr.mxu0 0.0
    %179 = vmatpush1.msra.mxu0 0.0
    %180 = vmatprep.subr.mxu0 0.0
    %181 = vmatpush1.msra.mxu0 0.0
    %182 = vmatprep.subr.mxu0 0.0
    %183 = vmatpush1.msra.mxu0 0.0
    %184 = vmatprep.subr.mxu0 0.0
    %185 = vmatpush1.msra.mxu0 0.0
    %186 = vmatprep.subr.mxu0 0.0
    %187 = vmatpush1.msra.mxu0 0.0
    %188 = vmatprep.subr.mxu0 0.0
    %189 = vmatpush1.msra.mxu0 0.0
    %190 = vmatprep.subr.mxu0 0.0
    %191 = vmatpush1.msra.mxu0 0.0
    %192 = vmatprep.subr.mxu0 0.0
    %193 = vmatpush1.msra.mxu0 %v156
    %194 = vmatprep.subr.mxu0 0.0
    %195 = vmatpush1.msra.mxu0 %v155
    %196 = vmatprep.subr.mxu0 0.0
    %197 = vmatpush1.msra.mxu0 %v154
    %198 = vmatprep.subr.mxu0 0.0
    %199 = vmatpush1.msra.mxu0 %v153
    %200 = vmatprep.subr.mxu0 0.0
    %201 = vmatpush2.msra.mxu0 0.0
    %202 = vmatprep.subr.mxu0 0.0
    %203 = vmatpush2.msra.mxu0 0.0
    %204 = vmatprep.subr.mxu0 0.0
    %205 = vmatpush2.msra.mxu0 0.0
    %206 = vmatprep.subr.mxu0 0.0
    %207 = vmatpush2.msra.mxu0 0.0
    %208 = vmatprep.subr.mxu0 0.0
    %209 = vmatpush2.msra.mxu0 0.0
    %210 = vmatprep.subr.mxu0 0.0
    %211 = vmatpush2.msra.mxu0 0.0
    %212 = vmatprep.subr.mxu0 0.0
    %213 = vmatpush2.msra.mxu0 0.0
    %214 = vmatprep.subr.mxu0 0.0
    %215 = vmatpush2.msra.mxu0 0.0
    %216 = vmatprep.subr.mxu0 0.0
    %217 = vmatpush2.msra.mxu0 0.0
    %218 = vmatprep.subr.mxu0 0.0
    %219 = vmatpush2.msra.mxu0 0.0
    %220 = vmatprep.subr.mxu0 0.0
    %221 = vmatpush2.msra.mxu0 0.0
    %222 = vmatprep.subr.mxu0 0.0
    %223 = vmatpush2.msra.mxu0 0.0
    %224 = vmatprep.subr.mxu0 0.0
    %225 = vmatpush2.msra.mxu0 0.0
    %226 = vmatprep.subr.mxu0 0.0
    %227 = vmatpush2.msra.mxu0 0.0
    %228 = vmatprep.subr.mxu0 0.0
    %229 = vmatpush2.msra.mxu0 0.0
    %230 = vmatprep.subr.mxu0 0.0
    %231 = vmatpush2.msra.mxu0 0.0
    %232 = vmatprep.mubr.f32.mxu0 0.0
    %233 = vmatmul.mubr.f32.gmra.mxu0 %v166
    %v234 = vpop.f32.mrf.mxu0
    %v235 = vadd.f32 %v162, %v234
    %v236 = vpop.f32.mrf.mxu0
    %237 = vdwg.mxu0
    %v238 = vtanh.pop %v235
    %v239 = vmul.f32 %v238, 0.05
    %v240 = vadd.f32 %v239, %v26
    %v241 = vmax.f32 %v240, -1.0
    %v242 = vmin.f32 %v241, 1.0
    %243 = vst [vmem:[#allocation2] sm:$0xff] %v242
    // Predicated region
    $region26: #{tpu_custom_call.1} parent=1 // pred_check
      _
    $region27: #{tpu_custom_call.1} parent=1 // pred_check_branch
      %245 = sbr.rel (0) target = $region29
    $region28: #{tpu_custom_call.1} parent=1 // pred_region
      %s247 = ssub.s32 128, 128
      %248 = vsyncadd [#allocation3], %s247
      %s250 = sshll.u32 [#allocation2], 4
      %s251 = int_to_ptr.vmem [resolvable:$true] %s250
      %253 = dma.vmem_to_hbm [thread:$0]  %s251, 128, %s6, [#allocation3]
    $region29: #{tpu_custom_call.1} parent=1 // pred_fallthru
      _
    // Predicated region
    $region30: #{tpu_custom_call.1} parent=1 // pred_check
      _
    $region31: #{tpu_custom_call.1} parent=1 // pred_check_branch
      %255 = sbr.rel (0) target = $region33
    $region32: #{tpu_custom_call.1} parent=1 // pred_region
      %256 = dma.done [#allocation3], 128
    $region33: #{tpu_custom_call.1} parent=1 // pred_fallthru
      _
    %257 = vsyncpa [#allocation3], 1

</llo_original>
